<compile_context>
chip_gen: v7x
topology: tpu7x:2x2x1
jax: 0.10.0
libtpu: 0.0.40
codegen_flags: <defaults>
</compile_context>

<pallas_src>
import functools

import jax
import jax.numpy as jnp
import numpy as np
from jax.experimental import pallas as pl
from jax.experimental.pallas import tpu as pltpu

TAU_MIN = 0.01
TAU_MAX = 0.99


# ----------------------------------------------------------------------------
# small helpers (tile / VMEM sizing)
# ----------------------------------------------------------------------------
def _largest_divisor(n, cap):
    for d in range(min(n, cap), 0, -1):
        if n % d == 0:
            return d
    return 1


def _pick_s_tile(s):
    """Set-size tile: full if small, else a 128-multiple (v7x-safe VMEM)."""
    if s <= 256:
        return s
    for t in (256, 128):
        if s % t == 0:
            return t
    return 256  # cdiv path: padded tail lanes never mix with valid lanes


def _vmem_limit_bytes():
    # v7x has 64 MiB VMEM/TC (32 MiB scoped default) vs 128 MiB on v5e/v6e —
    # derive the scoped limit from the actual chip when possible.
    get_info = getattr(pltpu, "get_tpu_info", None)
    if get_info is not None:
        try:
            cap = int(get_info().vmem_capacity_bytes)
            return int(min(cap * 3 // 4, 96 * 1024 * 1024))
        except Exception:
            pass
    return 32 * 1024 * 1024


# ----------------------------------------------------------------------------
# Encoder kernel: fused MLP + mean-pool over context + rep projection
# ----------------------------------------------------------------------------
def _encoder_kernel(cx_ref, cy_ref, w1x_ref, w1y_ref, b1_ref, w2_ref, b2_ref,
                    wp_ref, bp_ref, o_ref, acc_ref, *, num_context, mm_dtype):
    c = pl.program_id(1)

    @pl.when(c == 0)
    def _():
        acc_ref[...] = jnp.zeros_like(acc_ref)

    Bb, cb, X = cx_ref.shape
    Y = cy_ref.shape[2]
    E = b2_ref.shape[1]

    cx = cx_ref[...].reshape(Bb * cb, X)
    cy = cy_ref[...].reshape(Bb * cb, Y)

    def proj(v, w_ref):
        w = w_ref[...]
        if w.shape[0] == 1:                       # K == 1 -> VPU broadcast-mul
            return v * w
        return jnp.dot(v.astype(mm_dtype), w.astype(mm_dtype),
                       preferred_element_type=jnp.float32)

    h1 = jnp.maximum(proj(cx, w1x_ref) + proj(cy, w1y_ref) + b1_ref[...], 0.0)
    e = jnp.dot(h1.astype(mm_dtype), w2_ref[...].astype(mm_dtype),
                preferred_element_type=jnp.float32) + b2_ref[...]
    e3 = e.reshape(Bb, cb, E)

    if num_context % cb != 0:                     # mask tail chunk (trace-time branch)
        pt = jax.lax.broadcasted_iota(jnp.int32, (1, cb, 1), 1)
        e3 = jnp.where(c * cb + pt < num_context, e3, 0.0)

    acc_ref[...] += jnp.sum(e3, axis=1)           # (Bb, E)

    @pl.when(c == pl.num_programs(1) - 1)
    def _():
        mean_h = acc_ref[...] * (1.0 / num_context)               # (Bb, E)
        rep = jnp.dot(mean_h.astype(mm_dtype), wp_ref[...].astype(mm_dtype),
                      preferred_element_type=jnp.float32) + bp_ref[...]
        o_ref[...] = rep[:, None, :].astype(o_ref.dtype)          # (Bb, 1, Hd)


def encoder_forward(context_x, context_y, w1x, w1y, b1, w2, b2, wproj, bproj,
                    *, batch_block, ctx_block, mm_dtype, vmem_limit):
    """ctx_x [B,C,X], ctx_y [B,C,Y] -> rep_proj [B, 1, Hd] (= mean_hidden @ W1h + b1)."""
    B, C, X = context_x.shape
    Y = context_y.shape[2]
    Hd = wproj.shape[1]
    E = w2.shape[1]
    n_b = B // batch_block
    n_c = pl.cdiv(C, ctx_block)
    kernel = functools.partial(_encoder_kernel, num_context=C, mm_dtype=mm_dtype)
    return pl.pallas_call(
        kernel,
        out_shape=jax.ShapeDtypeStruct((B, 1, Hd), jnp.float32),
        grid_spec=pltpu.PrefetchScalarGridSpec(
            num_scalar_prefetch=0,
            grid=(n_b, n_c),
            in_specs=[
                pl.BlockSpec((batch_block, ctx_block, X), lambda b, c: (b, c, 0)),
                pl.BlockSpec((batch_block, ctx_block, Y), lambda b, c: (b, c, 0)),
                pl.BlockSpec(w1x.shape, lambda b, c: (0, 0)),
                pl.BlockSpec(w1y.shape, lambda b, c: (0, 0)),
                pl.BlockSpec(b1.shape, lambda b, c: (0, 0)),
                pl.BlockSpec(w2.shape, lambda b, c: (0, 0)),
                pl.BlockSpec(b2.shape, lambda b, c: (0, 0)),
                pl.BlockSpec(wproj.shape, lambda b, c: (0, 0)),
                pl.BlockSpec(bproj.shape, lambda b, c: (0, 0)),
            ],
            out_specs=pl.BlockSpec((batch_block, 1, Hd), lambda b, c: (b, 0, 0)),
            scratch_shapes=[pltpu.VMEM((batch_block, E), jnp.float32)],
        ),
        compiler_params=pltpu.CompilerParams(
            dimension_semantics=("parallel", "arbitrary"),
            vmem_limit_bytes=vmem_limit),
    )(context_x, context_y, w1x, w1y, b1, w2, b2, wproj, bproj)


# ----------------------------------------------------------------------------
# Fused decoder-MLP + softplus + UMAL log-likelihood kernel (S on lanes)
# ----------------------------------------------------------------------------
def _decoder_umal_kernel(rep_ref, x_ref, tau_ref, y_ref,
                         w1x_ref, w1t_ref, w2t_ref, b2t_ref,
                         o_ref, *, mm_dtype):
    T = tau_ref.shape[1]
    Hd = w2t_ref.shape[1]
    C3 = w2t_ref.shape[0]
    D = y_ref.shape[1]

    rep = rep_ref[0]                                   # (1, Hd) — includes dec b1
    xb = x_ref[0]                                      # (tS, X)
    if x_ref.shape[2] == 1:
        h_x = xb * w1x_ref[...]                        # (tS,1)*(1,Hd) VPU broadcast-mul
    else:
        h_x = jnp.dot(xb.astype(mm_dtype), w1x_ref[...].astype(mm_dtype),
                      preferred_element_type=jnp.float32)

    tau = tau_ref[0]                                   # (T, tS)
    h_tau = tau[:, :, None] * w1t_ref[...]             # (T, tS, Hd) VPU broadcast-mul

    h = jnp.maximum(h_tau + (rep + h_x)[None], 0.0)    # (T, tS, Hd)

    # Fused heads (loc|scale|mixture_weights) in ONE batched NT matmul so the
    # result lands as (T, 3D, tS): S stays on lanes, no relayout needed.
    w2b = jnp.broadcast_to(w2t_ref[...].astype(mm_dtype)[None], (T, C3, Hd))
    heads = jnp.einsum('tch,tsh->tcs', w2b, h.astype(mm_dtype),
                       preferred_element_type=jnp.float32)
    heads = heads + b2t_ref[...][None]                 # (T, 3D, tS)

    loc = heads[:, 0:D, :]
    raw_s = heads[:, D:2 * D, :]
    mw = heads[:, 2 * D:, :]

    # softplus(raw_scale) + 1e-3, numerically stable
    scale = jnp.maximum(raw_s, 0.0) + jnp.log1p(jnp.exp(-jnp.abs(raw_s))) + 1e-3

    # mixture log-softmax over the tau axis (axis 0 -> outer dim, cheap reduce)
    mw_max = jnp.max(mw, axis=0, keepdims=True)
    log_w = mw - (mw_max + jnp.log(jnp.sum(jnp.exp(mw - mw_max), axis=0,
                                           keepdims=True)))

    # asymmetric-Laplace log-density
    tau3 = tau[:, None, :]                             # (T, 1, tS)
    log_tau = jnp.log(tau3) + jnp.log1p(-tau3)
    u = (y_ref[0][None] - loc) / scale                 # (T, D, tS)
    ind = jnp.where(u < 0.0, 1.0, 0.0)
    log_pdf = log_tau - jnp.log(scale) - u * (tau3 - ind)

    # stable logsumexp over the mixture (T) axis, then sum over D in-kernel
    z = log_w + log_pdf
    z_max = jnp.max(z, axis=0, keepdims=True)
    ll = z_max + jnp.log(jnp.sum(jnp.exp(z - z_max), axis=0, keepdims=True))  # (1,D,tS)
    o_ref[...] = jnp.sum(ll, axis=1, keepdims=True).astype(o_ref.dtype)       # (1,1,tS)


def decoder_umal_forward(rep_proj, x_values, tau_bts, y_t, w1x, w1t, w2t, b2t,
                         *, s_tile, mm_dtype, vmem_limit):
    """rep_proj [B,1,Hd], x [B,S,X], tau [B,T,S], y_t [B,D,S] -> ll [B,1,S]."""
    B, S, X = x_values.shape
    T = tau_bts.shape[1]
    D = y_t.shape[1]
    Hd = w1x.shape[1]
    n_s = pl.cdiv(S, s_tile)
    kernel = functools.partial(_decoder_umal_kernel, mm_dtype=mm_dtype)
    return pl.pallas_call(
        kernel,
        out_shape=jax.ShapeDtypeStruct((B, 1, S), jnp.float32),
        grid_spec=pltpu.PrefetchScalarGridSpec(
            num_scalar_prefetch=0,
            grid=(B, n_s),
            in_specs=[
                pl.BlockSpec((1, 1, Hd), lambda b, s: (b, 0, 0)),
                pl.BlockSpec((1, s_tile, X), lambda b, s: (b, s, 0)),
                pl.BlockSpec((1, T, s_tile), lambda b, s: (b, 0, s)),
                pl.BlockSpec((1, D, s_tile), lambda b, s: (b, 0, s)),
                pl.BlockSpec((X, Hd), lambda b, s: (0, 0)),
                pl.BlockSpec((1, Hd), lambda b, s: (0, 0)),
                pl.BlockSpec((3 * D, Hd), lambda b, s: (0, 0)),
                pl.BlockSpec((3 * D, 1), lambda b, s: (0, 0)),
            ],
            out_specs=pl.BlockSpec((1, 1, s_tile), lambda b, s: (b, 0, s)),
        ),
        compiler_params=pltpu.CompilerParams(
            dimension_semantics=("parallel", "parallel"),
            vmem_limit_bytes=vmem_limit),
    )(rep_proj, x_values, tau_bts, y_t, w1x, w1t, w2t, b2t)


# ----------------------------------------------------------------------------
# Parameters
# ----------------------------------------------------------------------------
def init_params(key, x_dim, y_dim, encoder_dim, decoder_dim, output_dim,
                enc_hidden=32):
    ks = jax.random.split(key, 9)
    return {
        # encoder layer 1, pre-split by input block (context_x | context_y)
        "enc_w1_x": 0.2 * jax.random.normal(ks[0], (x_dim, enc_hidden), jnp.float32),
        "enc_w1_y": 0.2 * jax.random.normal(ks[1], (y_dim, enc_hidden), jnp.float32),
        "enc_b1": jnp.zeros((1, enc_hidden), jnp.float32),
        "enc_w2": 0.2 * jax.random.normal(ks[2], (enc_hidden, encoder_dim), jnp.float32),
        "enc_b2": jnp.zeros((1, encoder_dim), jnp.float32),
        # decoder layer 1, pre-split by input block (representation | x | tau)
        "dec_w1_h": 0.2 * jax.random.normal(ks[3], (encoder_dim, decoder_dim), jnp.float32),
        "dec_w1_x": 0.2 * jax.random.normal(ks[4], (x_dim, decoder_dim), jnp.float32),
        "dec_w1_tau": 0.2 * jax.random.normal(ks[5], (1, decoder_dim), jnp.float32),
        "dec_b1": jnp.zeros((1, decoder_dim), jnp.float32),
        # decoder heads (loc | scale | mixture_weights)
        "dec_w2_loc": 0.2 * jax.random.normal(ks[6], (decoder_dim, output_dim), jnp.float32),
        "dec_w2_scale": 0.2 * jax.random.normal(ks[7], (decoder_dim, output_dim), jnp.float32),
        "dec_w2_w": 0.2 * jax.random.normal(ks[8], (decoder_dim, output_dim), jnp.float32),
        "dec_b2_loc": jnp.zeros((1, output_dim), jnp.float32),
        "dec_b2_scale": jnp.zeros((1, output_dim), jnp.float32),
        "dec_b2_w": jnp.zeros((1, output_dim), jnp.float32),
    }


# ----------------------------------------------------------------------------
# Forward pass
# ----------------------------------------------------------------------------
def cqnp_forward(params, context_x, context_y, x_values, y_values, tau,
                 *, training=False, use_pallas=True, mm_dtype=jnp.bfloat16):
    if not use_pallas:
        return _reference_forward(params, context_x, context_y, x_values,
                                  y_values, tau, training)

    B, num_context, _ = context_x.shape
    S = x_values.shape[1]
    T = tau.shape[1]

    vmem_limit = _vmem_limit_bytes()

    # ---- Encoder: fused MLP + mean-pool + rep projection (Pallas) ----
    batch_block = _largest_divisor(B, 8)
    ctx_block = num_context if num_context <= 2048 else 2048
    rep_proj = encoder_forward(
        context_x, context_y,
        params["enc_w1_x"], params["enc_w1_y"], params["enc_b1"],
        params["enc_w2"], params["enc_b2"],
        params["dec_w1_h"], params["dec_b1"],
        batch_block=batch_block, ctx_block=ctx_block,
        mm_dtype=mm_dtype, vmem_limit=vmem_limit)              # [B, 1, Hd]

    # ---- Fused decoder + softplus + UMAL log-likelihood (Pallas) ----
    tau_bts = tau.reshape(B, T, S)                             # drop trailing 1
    y_t = jnp.swapaxes(y_values, 1, 2)                         # [B, D, S] (S on lanes)
    w2t = jnp.concatenate([params["dec_w2_loc"], params["dec_w2_scale"],
                           params["dec_w2_w"]], axis=1).T      # (3D, Hd) fused heads
    b2t = jnp.concatenate([params["dec_b2_loc"], params["dec_b2_scale"],
                           params["dec_b2_w"]], axis=1).T      # (3D, 1)

    s_tile = _pick_s_tile(S)
    lp = decoder_umal_forward(rep_proj, x_values, tau_bts, y_t,
                              params["dec_w1_x"], params["dec_w1_tau"], w2t, b2t,
                              s_tile=s_tile, mm_dtype=mm_dtype,
                              vmem_limit=vmem_limit)           # [B, 1, S]
    log_likelihood = lp[:, 0, :]                               # [B, S]

    # TODO(synk): the UMAL `dist` parameters (loc/scale/mixture_weights) are
    # fused away and never written to HBM; add an unfused path if sampling from
    # `dist` is needed.
    output = {}
    if training:
        output["loss"] = -log_likelihood.mean(-1).mean()
    else:
        output["ctx_ll"] = log_likelihood[..., :num_context].mean(-1).mean()
        output["tar_ll"] = log_likelihood[..., num_context:].mean(-1).mean()
    return output


# ----------------------------------------------------------------------------
# pure-JAX reference (correctness check only — follows the torch module flow)
# ----------------------------------------------------------------------------
def _reference_forward(params, context_x, context_y, x_values, y_values, tau,
                       training):
    B, num_context, x_dim = context_x.shape
    D = context_y.shape[-1]
    S = x_values.shape[1]
    T = tau.shape[1]

    enc_in = jnp.concatenate([context_x, context_y], -1).reshape(B * num_context, -1)
    w1e = jnp.concatenate([params["enc_w1_x"], params["enc_w1_y"]], axis=0)
    h = jnp.maximum(enc_in @ w1e + params["enc_b1"], 0.0)
    enc_out = h @ params["enc_w2"] + params["enc_b2"]
    hidden = enc_out.reshape(B, num_context, -1).mean(1)              # [B, E]
    E = hidden.shape[-1]

    rep = jnp.broadcast_to(hidden[:, None, None, :], (B, T, S, E)).reshape(B * T, S, E)
    xt = jnp.broadcast_to(x_values[:, None, :, :], (B, T, S, x_dim)).reshape(B * T, S, x_dim)
    tau_f = tau.reshape(B * T, S, 1)
    dec_in = jnp.concatenate([rep, xt, tau_f], -1).reshape(B * T * S, -1)

    w1 = jnp.concatenate([params["dec_w1_h"], params["dec_w1_x"],
                          params["dec_w1_tau"]], axis=0)
    w2 = jnp.concatenate([params["dec_w2_loc"], params["dec_w2_scale"],
                          params["dec_w2_w"]], axis=1)
    b2 = jnp.concatenate([params["dec_b2_loc"], params["dec_b2_scale"],
                          params["dec_b2_w"]], axis=1)
    hdec = jnp.maximum(dec_in @ w1 + params["dec_b1"], 0.0)
    out = (hdec @ w2 + b2).reshape(B, T, S, 3 * D)
    loc, raw_scale, mw = jnp.split(out, 3, axis=-1)
    scale = jax.nn.softplus(raw_scale) + 1e-3
    tau4 = jnp.broadcast_to(tau.reshape(B, T, S, 1), (B, T, S, D))

    log_w = jax.nn.log_softmax(mw, axis=1)
    u = (y_values[:, None] - loc) / scale
    ind = (u < 0.0).astype(jnp.float32)
    log_pdf = jnp.log(tau4) + jnp.log1p(-tau4) - jnp.log(scale) - u * (tau4 - ind)
    lp = jax.scipy.special.logsumexp(log_w + log_pdf, axis=1)
    log_likelihood = lp.sum(-1)

    output = {}
    if training:
        output["loss"] = -log_likelihood.mean(-1).mean()
    else:
        output["ctx_ll"] = log_likelihood[..., :num_context].mean(-1).mean()
        output["tar_ll"] = log_likelihood[..., num_context:].mean(-1).mean()
    return output


# ----------------------------------------------------------------------------
if __name__ == "__main__":
    key = jax.random.PRNGKey(0)
    k_par, k_x, k_y, k_tau = jax.random.split(key, 4)

    # small shapes
    B, num_context, set_size = 2, 8, 16
    x_dim, y_dim, output_dim = 1, 1, 1
    encoder_dim, decoder_dim = 32, 32
    num_tau = 4

    params = init_params(k_par, x_dim, y_dim, encoder_dim, decoder_dim, output_dim)

    x_values = jax.random.uniform(k_x, (B, set_size, x_dim), jnp.float32, -2.0, 2.0)
    y_values = jnp.sin(2.0 * x_values) + 0.1 * jax.random.normal(
        k_y, (B, set_size, y_dim), jnp.float32)
    context_x = x_values[:, :num_context, :]
    context_y = y_values[:, :num_context, :]
    tau = TAU_MIN + (TAU_MAX - TAU_MIN) * jax.random.uniform(
        k_tau, (B, num_tau, set_size, 1), jnp.float32)

    args = (params, context_x, context_y, x_values, y_values, tau)

    out = jax.block_until_ready(cqnp_forward(*args, training=False, use_pallas=True))
    ref = jax.block_until_ready(cqnp_forward(*args, training=False, use_pallas=False))
    tr = jax.block_until_ready(cqnp_forward(*args, training=True, use_pallas=True))
    tr_ref = jax.block_until_ready(cqnp_forward(*args, training=True, use_pallas=False))

    # Pallas path feeds bf16 operands to the MXU (f32 accumulation); the pure-JAX
    # reference is full f32 -> modest tolerance.
    np.testing.assert_allclose(np.asarray(out["ctx_ll"]), np.asarray(ref["ctx_ll"]),
                               rtol=5e-2, atol=5e-2)
    np.testing.assert_allclose(np.asarray(out["tar_ll"]), np.asarray(ref["tar_ll"]),
                               rtol=5e-2, atol=5e-2)
    np.testing.assert_allclose(np.asarray(tr["loss"]), np.asarray(tr_ref["loss"]),
                               rtol=5e-2, atol=5e-2)
    assert np.isfinite(float(out["ctx_ll"])) and np.isfinite(float(out["tar_ll"]))

    print("KERNEL_OK")
</pallas_src>

<mosaic_0001>
module attributes {stable_mosaic.version = 11 : i64} {
  func.func @_encoder_kernel(%arg0: i32, %arg1: i32, %arg2: memref<2x8x1xf32, #tpu.memory_space<vmem>>, %arg3: memref<2x8x1xf32, #tpu.memory_space<vmem>>, %arg4: memref<1x32xf32, #tpu.memory_space<vmem>>, %arg5: memref<1x32xf32, #tpu.memory_space<vmem>>, %arg6: memref<1x32xf32, #tpu.memory_space<vmem>>, %arg7: memref<32x32xf32, #tpu.memory_space<vmem>>, %arg8: memref<1x32xf32, #tpu.memory_space<vmem>>, %arg9: memref<32x32xf32, #tpu.memory_space<vmem>>, %arg10: memref<1x32xf32, #tpu.memory_space<vmem>>, %arg11: memref<2x1x32xf32, #tpu.memory_space<vmem>>, %arg12: memref<2x32xf32, #tpu.memory_space<vmem>>) attributes {dimension_semantics = [#tpu.dimension_semantics<parallel>, #tpu.dimension_semantics<arbitrary>], iteration_bounds = array<i64: 1, 1>, scalar_prefetch = 0 : i64, scratch_operands = 1 : i64, tpu.core_type = #tpu.core_type<tc>, window_params = [{transform_indices = @transform_0, window_bounds = array<i64: 2, 8, 1>}, {transform_indices = @transform_1, window_bounds = array<i64: 2, 8, 1>}, {pipeline_mode = #tpu.pipeline_mode<synchronous>, transform_indices = @transform_2, window_bounds = array<i64: 1, 32>}, {pipeline_mode = #tpu.pipeline_mode<synchronous>, transform_indices = @transform_3, window_bounds = array<i64: 1, 32>}, {pipeline_mode = #tpu.pipeline_mode<synchronous>, transform_indices = @transform_4, window_bounds = array<i64: 1, 32>}, {pipeline_mode = #tpu.pipeline_mode<synchronous>, transform_indices = @transform_5, window_bounds = array<i64: 32, 32>}, {pipeline_mode = #tpu.pipeline_mode<synchronous>, transform_indices = @transform_6, window_bounds = array<i64: 1, 32>}, {pipeline_mode = #tpu.pipeline_mode<synchronous>, transform_indices = @transform_7, window_bounds = array<i64: 32, 32>}, {pipeline_mode = #tpu.pipeline_mode<synchronous>, transform_indices = @transform_8, window_bounds = array<i64: 1, 32>}, {transform_indices = @transform_9, window_bounds = array<i64: 2, 1, 32>}]} {
    %c0_i32 = arith.constant 0 : i32
    %0 = arith.cmpi eq, %arg1, %c0_i32 : i32
    %1 = arith.extui %0 : i1 to i32
    %c0_i32_0 = arith.constant 0 : i32
    %2 = arith.cmpi ne, %1, %c0_i32_0 : i32
    scf.if %2 {
      %cst_24 = arith.constant 0.000000e+00 : f32
      %36 = vector.broadcast %cst_24 : f32 to vector<2x32xf32>
      %c0_25 = arith.constant 0 : index
      %c0_26 = arith.constant 0 : index
      %37 = vector.load %arg12[%c0_25, %c0_26] : memref<2x32xf32, #tpu.memory_space<vmem>>, vector<2x32xf32>
      tpu.vector_store %arg12[%c0_25, %c0_26], %36 {strides = array<i32>} : memref<2x32xf32, #tpu.memory_space<vmem>>, vector<2x32xf32>,
    } else {
    }
    %c0 = arith.constant 0 : index
    %c0_1 = arith.constant 0 : index
    %c0_2 = arith.constant 0 : index
    %3 = vector.load %arg2[%c0, %c0_1, %c0_2] : memref<2x8x1xf32, #tpu.memory_space<vmem>>, vector<2x8x1xf32>
    %4 = vector.shape_cast %3 : vector<2x8x1xf32> to vector<16x1xf32>
    %c0_3 = arith.constant 0 : index
    %c0_4 = arith.constant 0 : index
    %c0_5 = arith.constant 0 : index
    %5 = vector.load %arg3[%c0_3, %c0_4, %c0_5] : memref<2x8x1xf32, #tpu.memory_space<vmem>>, vector<2x8x1xf32>
    %6 = vector.shape_cast %5 : vector<2x8x1xf32> to vector<16x1xf32>
    %c0_6 = arith.constant 0 : index
    %c0_7 = arith.constant 0 : index
    %7 = vector.load %arg4[%c0_6, %c0_7] : memref<1x32xf32, #tpu.memory_space<vmem>>, vector<1x32xf32>
    %8 = vector.broadcast %4 : vector<16x1xf32> to vector<16x32xf32>
    %9 = vector.broadcast %7 : vector<1x32xf32> to vector<16x32xf32>
    %10 = arith.mulf %8, %9 : vector<16x32xf32>
    %c0_8 = arith.constant 0 : index
    %c0_9 = arith.constant 0 : index
    %11 = vector.load %arg5[%c0_8, %c0_9] : memref<1x32xf32, #tpu.memory_space<vmem>>, vector<1x32xf32>
    %12 = vector.broadcast %6 : vector<16x1xf32> to vector<16x32xf32>
    %13 = vector.broadcast %11 : vector<1x32xf32> to vector<16x32xf32>
    %14 = arith.mulf %12, %13 : vector<16x32xf32>
    %15 = arith.addf %10, %14 : vector<16x32xf32>
    %c0_10 = arith.constant 0 : index
    %c0_11 = arith.constant 0 : index
    %16 = vector.load %arg6[%c0_10, %c0_11] : memref<1x32xf32, #tpu.memory_space<vmem>>, vector<1x32xf32>
    %17 = vector.broadcast %16 : vector<1x32xf32> to vector<16x32xf32>
    %18 = arith.addf %15, %17 : vector<16x32xf32>
    %cst = arith.constant 0.000000e+00 : f32
    %19 = vector.broadcast %cst : f32 to vector<16x32xf32>
    %20 = arith.maximumf %18, %19 : vector<16x32xf32>
    %21 = arith.truncf %20 : vector<16x32xf32> to vector<16x32xbf16>
    %c0_12 = arith.constant 0 : index
    %c0_13 = arith.constant 0 : index
    %22 = vector.load %arg7[%c0_12, %c0_13] : memref<32x32xf32, #tpu.memory_space<vmem>>, vector<32x32xf32>
    %23 = arith.truncf %22 : vector<32x32xf32> to vector<32x32xbf16>
    %cst_14 = arith.constant dense<0.000000e+00> : vector<16x32xf32>
    %24 = tpu.matmul %21, %23, %cst_14 {dimension_numbers = #tpu.dot_dimension_numbers<[1], [0], [0], [1], [0, 0, 1, 1], [], []>} : vector<16x32xbf16>, vector<32x32xbf16>, vector<16x32xf32> -> vector<16x32xf32>
    %c0_15 = arith.constant 0 : index
    %c0_16 = arith.constant 0 : index
    %25 = vector.load %arg8[%c0_15, %c0_16] : memref<1x32xf32, #tpu.memory_space<vmem>>, vector<1x32xf32>
    %26 = vector.broadcast %25 : vector<1x32xf32> to vector<16x32xf32>
    %27 = arith.addf %24, %26 : vector<16x32xf32>
    %28 = vector.shape_cast %27 : vector<16x32xf32> to vector<2x8x32xf32>
    %c0_17 = arith.constant 0 : index
    %c0_18 = arith.constant 0 : index
    %29 = vector.load %arg12[%c0_17, %c0_18] : memref<2x32xf32, #tpu.memory_space<vmem>>, vector<2x32xf32>
    %cst_19 = arith.constant dense<0.000000e+00> : vector<2x32xf32>
    %30 = vector.multi_reduction <add>, %28, %cst_19 [1] : vector<2x8x32xf32> to vector<2x32xf32>
    %31 = arith.addf %29, %30 : vector<2x32xf32>
    %c0_20 = arith.constant 0 : index
    %c0_21 = arith.constant 0 : index
    %32 = vector.load %arg12[%c0_20, %c0_21] : memref<2x32xf32, #tpu.memory_space<vmem>>, vector<2x32xf32>
    tpu.vector_store %arg12[%c0_20, %c0_21], %31 {strides = array<i32>} : memref<2x32xf32, #tpu.memory_space<vmem>>, vector<2x32xf32>,
    %c0_i32_22 = arith.constant 0 : i32
    %33 = arith.cmpi eq, %arg1, %c0_i32_22 : i32
    %34 = arith.extui %33 : i1 to i32
    %c0_i32_23 = arith.constant 0 : i32
    %35 = arith.cmpi ne, %34, %c0_i32_23 : i32
    scf.if %35 {
      %c0_24 = arith.constant 0 : index
      %c0_25 = arith.constant 0 : index
      %36 = vector.load %arg12[%c0_24, %c0_25] : memref<2x32xf32, #tpu.memory_space<vmem>>, vector<2x32xf32>
      %cst_26 = arith.constant 1.250000e-01 : f32
      %37 = vector.broadcast %cst_26 : f32 to vector<2x32xf32>
      %38 = arith.mulf %36, %37 : vector<2x32xf32>
      %39 = arith.truncf %38 : vector<2x32xf32> to vector<2x32xbf16>
      %c0_27 = arith.constant 0 : index
      %c0_28 = arith.constant 0 : index
      %40 = vector.load %arg9[%c0_27, %c0_28] : memref<32x32xf32, #tpu.memory_space<vmem>>, vector<32x32xf32>
      %41 = arith.truncf %40 : vector<32x32xf32> to vector<32x32xbf16>
      %cst_29 = arith.constant dense<0.000000e+00> : vector<2x32xf32>
      %42 = tpu.matmul %39, %41, %cst_29 {dimension_numbers = #tpu.dot_dimension_numbers<[1], [0], [0], [1], [0, 0, 1, 1], [], []>} : vector<2x32xbf16>, vector<32x32xbf16>, vector<2x32xf32> -> vector<2x32xf32>
      %c0_30 = arith.constant 0 : index
      %c0_31 = arith.constant 0 : index
      %43 = vector.load %arg10[%c0_30, %c0_31] : memref<1x32xf32, #tpu.memory_space<vmem>>, vector<1x32xf32>
      %44 = vector.broadcast %43 : vector<1x32xf32> to vector<2x32xf32>
      %45 = arith.addf %42, %44 : vector<2x32xf32>
      %46 = vector.shape_cast %45 : vector<2x32xf32> to vector<2x1x32xf32>
      %c0_32 = arith.constant 0 : index
      %c0_33 = arith.constant 0 : index
      %c0_34 = arith.constant 0 : index
      %47 = vector.load %arg11[%c0_32, %c0_33, %c0_34] : memref<2x1x32xf32, #tpu.memory_space<vmem>>, vector<2x1x32xf32>
      tpu.vector_store %arg11[%c0_32, %c0_33, %c0_34], %46 {strides = array<i32>} : memref<2x1x32xf32, #tpu.memory_space<vmem>>, vector<2x1x32xf32>,
    } else {
    }
    return
  }
  func.func @transform_0(%arg0: i32, %arg1: i32) -> (i32, i32, i32) {
    %c0_i32 = arith.constant 0 : i32
    %c0_i32_0 = arith.constant 0 : i32
    return %arg0, %arg1, %c0_i32 : i32, i32, i32
  }
  func.func @transform_1(%arg0: i32, %arg1: i32) -> (i32, i32, i32) {
    %c0_i32 = arith.constant 0 : i32
    %c0_i32_0 = arith.constant 0 : i32
    return %arg0, %arg1, %c0_i32 : i32, i32, i32
  }
  func.func @transform_2(%arg0: i32, %arg1: i32) -> (i32, i32) {
    %c0_i32 = arith.constant 0 : i32
    %c0_i32_0 = arith.constant 0 : i32
    %c0_i32_1 = arith.constant 0 : i32
    return %c0_i32, %c0_i32_0 : i32, i32
  }
  func.func @transform_3(%arg0: i32, %arg1: i32) -> (i32, i32) {
    %c0_i32 = arith.constant 0 : i32
    %c0_i32_0 = arith.constant 0 : i32
    %c0_i32_1 = arith.constant 0 : i32
    return %c0_i32, %c0_i32_0 : i32, i32
  }
  func.func @transform_4(%arg0: i32, %arg1: i32) -> (i32, i32) {
    %c0_i32 = arith.constant 0 : i32
    %c0_i32_0 = arith.constant 0 : i32
    %c0_i32_1 = arith.constant 0 : i32
    return %c0_i32, %c0_i32_0 : i32, i32
  }
  func.func @transform_5(%arg0: i32, %arg1: i32) -> (i32, i32) {
    %c0_i32 = arith.constant 0 : i32
    %c0_i32_0 = arith.constant 0 : i32
    %c0_i32_1 = arith.constant 0 : i32
    return %c0_i32, %c0_i32_0 : i32, i32
  }
  func.func @transform_6(%arg0: i32, %arg1: i32) -> (i32, i32) {
    %c0_i32 = arith.constant 0 : i32
    %c0_i32_0 = arith.constant 0 : i32
    %c0_i32_1 = arith.constant 0 : i32
    return %c0_i32, %c0_i32_0 : i32, i32
  }
  func.func @transform_7(%arg0: i32, %arg1: i32) -> (i32, i32) {
    %c0_i32 = arith.constant 0 : i32
    %c0_i32_0 = arith.constant 0 : i32
    %c0_i32_1 = arith.constant 0 : i32
    return %c0_i32, %c0_i32_0 : i32, i32
  }
  func.func @transform_8(%arg0: i32, %arg1: i32) -> (i32, i32) {
    %c0_i32 = arith.constant 0 : i32
    %c0_i32_0 = arith.constant 0 : i32
    %c0_i32_1 = arith.constant 0 : i32
    return %c0_i32, %c0_i32_0 : i32, i32
  }
  func.func @transform_9(%arg0: i32, %arg1: i32) -> (i32, i32, i32) {
    %c0_i32 = arith.constant 0 : i32
    %c0_i32_0 = arith.constant 0 : i32
    %c0_i32_1 = arith.constant 0 : i32
    return %arg0, %c0_i32, %c0_i32_0 : i32, i32, i32
  }
}

</mosaic_0001>

<llo_original>
// kernel: tpu_custom_call.1
$region0: #{tpu_custom_call.1}
  #allocation0 [shape = 'u32[]', space=smem, size = 0x4, offset = 0x4, fixed_abs, tag = 'smem constant byte address 0x4 - core index']
  #allocation1 [shape = 'u32[144,128]{1,0:T(1,128)}', space=vmem, size = 0x12000, scoped, tag = 'internal scratch']
  #allocation2 [shape = 'f32[2,32]{1,0:T(2,128)}', space=vmem, size = 0x400, scoped, tag = 'scratch operand']
  %s0 = inlined_call_operand.vmem [shape: f32[2,8,1], index: 0, kind: input, shape index: {}]
  %s1 = inlined_call_operand.vmem [shape: f32[2,8,1], index: 1, kind: input, shape index: {}]
  %s2 = inlined_call_operand.vmem [shape: f32[1,32], index: 2, kind: input, shape index: {}]
  %s3 = inlined_call_operand.vmem [shape: f32[1,32], index: 3, kind: input, shape index: {}]
  %s4 = inlined_call_operand.vmem [shape: f32[1,32], index: 4, kind: input, shape index: {}]
  %s5 = inlined_call_operand.vmem [shape: f32[32,32], index: 5, kind: input, shape index: {}]
  %s6 = inlined_call_operand.vmem [shape: f32[1,32], index: 6, kind: input, shape index: {}]
  %s7 = inlined_call_operand.hbm [shape: f32[32,32], index: 7, kind: input, shape index: {}]
  %s8 = inlined_call_operand.vmem [shape: f32[1,32], index: 8, kind: input, shape index: {}]
  %s9 = inlined_call_operand.hbm [shape: f32[2,1,32], index: 9, kind: output, shape index: {}]
  %s10 = sld [smem:[#allocation0]]
  $region58: #{tpu_custom_call.1} parent=0
    _
  %s12 = ssub.s32 1, %s10
  %s13 = scalar_select 0, %s12, %s10
  $region1: #{tpu_custom_call.1} parent=0
    #allocation3 [shape = 'u8[16384]{0}', space=vmem, size = 0x4000, scoped, tag = 'input window, operand 7, single buffered']
    #allocation4 [shape = 's32[1]{0}', space=sflag, size = 0x4, scoped, tag = 'scoped memory for tpu_custom_call.1']
    #allocation5 [shape = 's32[1]{0}', space=sflag, size = 0x4, scoped, tag = 'scoped memory for tpu_custom_call.1']
    #allocation6 [shape = 'u8[1024]{0}', space=vmem, size = 0x400, scoped, tag = 'output window, operand 0, single buffered']
    %14 = vsyncpa [#allocation4], 0
    %15 = vsyncpa [#allocation5], 0
    // Predicated region
    $region2: #{tpu_custom_call.1} parent=1 // pred_check
      _
    $region3: #{tpu_custom_call.1} parent=1 // pred_check_branch
      %17 = sbr.rel (0) target = $region5
    $region4: #{tpu_custom_call.1} parent=1 // pred_region
      _
    $region5: #{tpu_custom_call.1} parent=1 // pred_fallthru
      _
    // Predicated region
    $region6: #{tpu_custom_call.1} parent=1 // pred_check
      _
    $region7: #{tpu_custom_call.1} parent=1 // pred_check_branch
      %19 = sbr.rel (0) target = $region9
    $region8: #{tpu_custom_call.1} parent=1 // pred_region
      _
    $region9: #{tpu_custom_call.1} parent=1 // pred_fallthru
      _
    // Predicated region
    $region10: #{tpu_custom_call.1} parent=1 // pred_check
      _
    $region11: #{tpu_custom_call.1} parent=1 // pred_check_branch
      %21 = sbr.rel (0) target = $region13
    $region12: #{tpu_custom_call.1} parent=1 // pred_region
      _
    $region13: #{tpu_custom_call.1} parent=1 // pred_fallthru
      _
    // Predicated region
    $region14: #{tpu_custom_call.1} parent=1 // pred_check
      _
    $region15: #{tpu_custom_call.1} parent=1 // pred_check_branch
      %23 = sbr.rel (0) target = $region17
    $region16: #{tpu_custom_call.1} parent=1 // pred_region
      _
    $region17: #{tpu_custom_call.1} parent=1 // pred_fallthru
      _
    // Predicated region
    $region18: #{tpu_custom_call.1} parent=1 // pred_check
      _
    $region19: #{tpu_custom_call.1} parent=1 // pred_check_branch
      %25 = sbr.rel (0) target = $region21
    $region20: #{tpu_custom_call.1} parent=1 // pred_region
      _
    $region21: #{tpu_custom_call.1} parent=1 // pred_fallthru
      _
    // Predicated region
    $region22: #{tpu_custom_call.1} parent=1 // pred_check
      _
    $region23: #{tpu_custom_call.1} parent=1 // pred_check_branch
      %27 = sbr.rel (0) target = $region25
    $region24: #{tpu_custom_call.1} parent=1 // pred_region
      _
    $region25: #{tpu_custom_call.1} parent=1 // pred_fallthru
      _
    // Predicated region
    $region26: #{tpu_custom_call.1} parent=1 // pred_check
      _
    $region27: #{tpu_custom_call.1} parent=1 // pred_check_branch
      %29 = sbr.rel (0) target = $region29
    $region28: #{tpu_custom_call.1} parent=1 // pred_region
      _
    $region29: #{tpu_custom_call.1} parent=1 // pred_fallthru
      _
    // Predicated region
    $region30: #{tpu_custom_call.1} parent=1 // pred_check
      _
    $region31: #{tpu_custom_call.1} parent=1 // pred_check_branch
      %31 = sbr.rel (0) target = $region33
    $region32: #{tpu_custom_call.1} parent=1 // pred_region
      %s33 = ssub.s32 512, 512
      %34 = vsyncadd [#allocation4], %s33
      %s35 = sshll.u32 [#allocation3], 4
      %s36 = int_to_ptr.vmem [resolvable:$true] %s35
      %41 = dma.hbm_to_vmem [thread:$0]  %s7, 512, %s36, [#allocation4], 128, 128, 8
    $region33: #{tpu_custom_call.1} parent=1 // pred_fallthru
      _
    // Predicated region
    $region34: #{tpu_custom_call.1} parent=1 // pred_check
      _
    $region35: #{tpu_custom_call.1} parent=1 // pred_check_branch
      %43 = sbr.rel (0) target = $region37
    $region36: #{tpu_custom_call.1} parent=1 // pred_region
      _
    $region37: #{tpu_custom_call.1} parent=1 // pred_fallthru
      _
    // Predicated region
    $region38: #{tpu_custom_call.1} parent=1 // pred_check
      _
    $region39: #{tpu_custom_call.1} parent=1 // pred_check_branch
      %45 = sbr.rel (0) target = $region41
    $region40: #{tpu_custom_call.1} parent=1 // pred_region
      %46 = dma.done [#allocation4], 512
    $region41: #{tpu_custom_call.1} parent=1 // pred_fallthru
      _
    %p48 = scmp.eq.s32.totalorder 0, 0
    // Predicated region
    $region42: #{tpu_custom_call.1} parent=1 // pred_check
      %p49 = pneg %p48
    $region43: #{tpu_custom_call.1} parent=1 // pred_check_branch
      %51 = sbr.rel (%p49) target = $region45
    $region44: #{tpu_custom_call.1} parent=1 // pred_region
      %vm52 = vcmask 254976
      %53 = vst.msk [vmem:[#allocation2] sm:$0x3] %vm52, 0.0
    $region45: #{tpu_custom_call.1} parent=1 // pred_fallthru
      _
    %v54 = vld [vmem:[%s0] sm:$0xff]
    %v55 = vld [vmem:[%s0 + $0x8] sm:$0xff]
    %v56 = vld [vmem:[%s1] sm:$0xff]
    %v57 = vld [vmem:[%s1 + $0x8] sm:$0xff]
    %v58 = vld [vmem:[%s2] sm:$0x1]
    %60 = vset.pattern.permute.xlu0 0
    %61 = vperm.xlu0 %60, %v54
    %v62 = vpop.permute.xlu0 %61
    %65 = vset.pattern.permute.xlu0 0
    %66 = vperm.xlu0 %65, %v55
    %v67 = vpop.permute.xlu0 %66
    %v70 = vlaneseq
    %v71 = vshrl.u32 %v70, 7
    %v72 = vsub.s32 0, %v71
    %v73 = vrot.slane %v58, %v72
    %v75 = vmul.f32 %v62, %v73
    %v76 = vmul.f32 %v67, %v73
    %v77 = vld [vmem:[%s3] sm:$0x1]
    %79 = vset.pattern.permute.xlu0 0
    %80 = vperm.xlu0 %79, %v56
    %v81 = vpop.permute.xlu0 %80
    %84 = vset.pattern.permute.xlu0 0
    %85 = vperm.xlu0 %84, %v57
    %v86 = vpop.permute.xlu0 %85
    %v89 = vlaneseq
    %v90 = vshrl.u32 %v89, 7
    %v91 = vsub.s32 0, %v90
    %v92 = vrot.slane %v77, %v91
    %v94 = vmul.f32 %v81, %v92
    %v95 = vmul.f32 %v86, %v92
    %v96 = vadd.f32 %v75, %v94
    %v97 = vadd.f32 %v76, %v95
    %v98 = vld [vmem:[%s4] sm:$0x1]
    %v100 = vlaneseq
    %v101 = vshrl.u32 %v100, 7
    %v102 = vsub.s32 0, %v101
    %v103 = vrot.slane %v98, %v102
    %v105 = vadd.f32 %v96, %v103
    %v106 = vadd.f32 %v97, %v103
    %v107 = vmax.f32 %v105, 0.0
    %v108 = vmax.f32 %v106, 0.0
    %v109 = vpack.c.bf16 %v108, %v107
    %v110 = vld [vmem:[%s5] sm:$0xff]
    %v111 = vld [vmem:[%s5 + $0x8] sm:$0xff]
    %v112 = vld [vmem:[%s5 + $0x10] sm:$0xff]
    %v113 = vld [vmem:[%s5 + $0x18] sm:$0xff]
    %v114 = vpack.c.bf16 %v111, %v110
    %v115 = vpack.c.bf16 %v113, %v112
    %v116 = vld [vmem:[%s6] sm:$0x1]
    %v118 = vlaneseq
    %v119 = vshrl.u32 %v118, 7
    %v120 = vsub.s32 0, %v119
    %v121 = vrot.slane %v116, %v120
    %vm123 = vcmask 261120
    %v125 = vsel %vm123, %v109, 0
    %127 = vmatprep.subr.bf16.mxu0 0
    %128 = vmatpush1.bf16.msra.mxu0 %v114
    %129 = vmatprep.subr.bf16.mxu0 0
    %130 = vmatpush1.bf16.msra.mxu0 %v115
    %131 = vmatprep.subr.bf16.mxu0 0
    %132 = vmatpush1.bf16.msra.mxu0 0
    %133 = vmatprep.subr.bf16.mxu0 0
    %134 = vmatpush1.bf16.msra.mxu0 0
    %135 = vmatprep.subr.bf16.mxu0 0
    %136 = vmatpush1.bf16.msra.mxu0 0
    %137 = vmatprep.subr.bf16.mxu0 0
    %138 = vmatpush1.bf16.msra.mxu0 0
    %139 = vmatprep.subr.bf16.mxu0 0
    %140 = vmatpush1.bf16.msra.mxu0 0
    %141 = vmatprep.subr.bf16.mxu0 0
    %142 = vmatpush1.bf16.msra.mxu0 0
    %143 = vmatprep.subr.bf16.mxu0 0
    %144 = vmatpush1.bf16.msra.mxu0 0
    %145 = vmatprep.subr.bf16.mxu0 0
    %146 = vmatpush1.bf16.msra.mxu0 0
    %147 = vmatprep.subr.bf16.mxu0 0
    %148 = vmatpush1.bf16.msra.mxu0 0
    %149 = vmatprep.subr.bf16.mxu0 0
    %150 = vmatpush1.bf16.msra.mxu0 0
    %151 = vmatprep.subr.bf16.mxu0 0
    %152 = vmatpush1.bf16.msra.mxu0 0
    %153 = vmatprep.subr.bf16.mxu0 0
    %154 = vmatpush1.bf16.msra.mxu0 0
    %155 = vmatprep.subr.bf16.mxu0 0
    %156 = vmatpush1.bf16.msra.mxu0 0
    %157 = vmatprep.subr.bf16.mxu0 0
    %158 = vmatpush1.bf16.msra.mxu0 0
    %159 = vmatprep.mubr.bf16.mxu0 0
    %160 = vmatmul.mubr.bf16.gmra.mrb[0].mxu0 %v125
    %v161 = vpop.f32.mrb[0].mxu0
    %v162 = vadd.f32 %v121, %v161
    %v163 = vpop.f32.mrb[0].mxu0
    %v164 = vpop.f32.mrb[0].mxu0
    %v165 = vadd.f32 %v121, %v164
    %v166 = vpop.f32.mrb[0].mxu0
    %167 = vdwg.mxu0
    %v168 = vld [vmem:[#allocation2] sm:$0x3]
    %v169 = vsel %vm123, %v162, 0.0
    %v170 = vrot.slane %v169, 4
    %v171 = vadd.f32 %v169, %v170
    %v172 = vrot.slane %v171, 2
    %v173 = vadd.f32 %v171, %v172
    %v174 = vrot.slane %v173, 1
    %v175 = vadd.f32 %v173, %v174
    %v176 = vsel %vm123, %v165, 0.0
    %v177 = vrot.slane %v176, 4
    %v178 = vadd.f32 %v176, %v177
    %v179 = vrot.slane %v178, 2
    %v180 = vadd.f32 %v178, %v179
    %v181 = vrot.slane %v180, 1
    %v182 = vadd.f32 %v180, %v181
    %vm185 = vcmask 1041409
    %v186 = vsel %vm185, %v182, %v175
    %v188 = vadd.f32 %v168, %v186
    %vm189 = vcmask 254976
    %190 = vst.msk [vmem:[#allocation2] sm:$0x3] %vm189, %v188
    // Predicated region
    $region46: #{tpu_custom_call.1} parent=1 // pred_check
      %p191 = pneg %p48
    $region47: #{tpu_custom_call.1} parent=1 // pred_check_branch
      %193 = sbr.rel (%p191) target = $region49
    $region48: #{tpu_custom_call.1} parent=1 // pred_region
      %v194 = vld [vmem:[#allocation2] sm:$0x3]
      %v195 = vmul.f32 %v194, 0.125
      %v196 = vpack.c.bf16 %v195, %v195
      %v197 = vld [vmem:[#allocation3] sm:$0xff]
      %v198 = vld [vmem:[#allocation3 + $0x8] sm:$0xff]
      %v199 = vld [vmem:[#allocation3 + $0x10] sm:$0xff]
      %v200 = vld [vmem:[#allocation3 + $0x18] sm:$0xff]
      %v201 = vpack.c.bf16 %v198, %v197
      %v202 = vpack.c.bf16 %v200, %v199
      %v203 = vld [vmem:[%s8] sm:$0x1]
      %v205 = vlaneseq
      %v206 = vshrl.u32 %v205, 7
      %v207 = vsub.s32 0, %v206
      %v208 = vrot.slane %v203, %v207
      %v211 = vsel %vm123, %v196, 0
      %213 = vmatprep.subr.bf16.mxu0 0
      %214 = vmatpush1.bf16.msra.mxu0 %v201
      %215 = vmatprep.subr.bf16.mxu0 0
      %216 = vmatpush1.bf16.msra.mxu0 %v202
      %217 = vmatprep.subr.bf16.mxu0 0
      %218 = vmatpush1.bf16.msra.mxu0 0
      %219 = vmatprep.subr.bf16.mxu0 0
      %220 = vmatpush1.bf16.msra.mxu0 0
      %221 = vmatprep.subr.bf16.mxu0 0
      %222 = vmatpush1.bf16.msra.mxu0 0
      %223 = vmatprep.subr.bf16.mxu0 0
      %224 = vmatpush1.bf16.msra.mxu0 0
      %225 = vmatprep.subr.bf16.mxu0 0
      %226 = vmatpush1.bf16.msra.mxu0 0
      %227 = vmatprep.subr.bf16.mxu0 0
      %228 = vmatpush1.bf16.msra.mxu0 0
      %229 = vmatprep.subr.bf16.mxu0 0
      %230 = vmatpush1.bf16.msra.mxu0 0
      %231 = vmatprep.subr.bf16.mxu0 0
      %232 = vmatpush1.bf16.msra.mxu0 0
      %233 = vmatprep.subr.bf16.mxu0 0
      %234 = vmatpush1.bf16.msra.mxu0 0
      %235 = vmatprep.subr.bf16.mxu0 0
      %236 = vmatpush1.bf16.msra.mxu0 0
      %237 = vmatprep.subr.bf16.mxu0 0
      %238 = vmatpush1.bf16.msra.mxu0 0
      %239 = vmatprep.subr.bf16.mxu0 0
      %240 = vmatpush1.bf16.msra.mxu0 0
      %241 = vmatprep.subr.bf16.mxu0 0
      %242 = vmatpush1.bf16.msra.mxu0 0
      %243 = vmatprep.subr.bf16.mxu0 0
      %244 = vmatpush1.bf16.msra.mxu0 0
      %245 = vmatprep.mubr.bf16.mxu0 0
      %246 = vmatmul.mubr.bf16.gmra.mrb[0].mxu0 %v211
      %v247 = vpop.f32.mrb[0].mxu0
      %v248 = vadd.f32 %v208, %v247
      %v249 = vpop.f32.mrb[0].mxu0
      %v250 = vpop.f32.mrb[0].mxu0
      %v251 = vpop.f32.mrb[0].mxu0
      %252 = vdwg.mxu0
      %v255 = vunpack.c.l.s4 1966171168
      %v256 = vunpack.c.0.s8 %v255
      %v257 = vlaneseq
      %v258 = vshrl.u32 %v257, 7
      %v259 = vsub.s32 %v256, %v258
      %v260 = vrot.slane %v248, %v259
      %v261 = vcombine.high %v260, %v260
      %v263 = vunpack.c.l.s4 1966171168
      %v264 = vunpack.c.0.s8 %v263
      %v265 = vlaneseq
      %v266 = vshrl.u32 %v265, 7
      %v267 = vsub.s32 %v264, %v266
      %v268 = vrot.slane %v260, %v267
      %v270 = vunpack.c.l.s4 1966171168
      %v271 = vunpack.c.0.s8 %v270
      %v272 = vlaneseq
      %v273 = vshrl.u32 %v272, 7
      %v274 = vsub.s32 %v271, %v273
      %v275 = vrot.slane %v261, %v274
      %vm278 = vcmask 253952
      %279 = vst.msk [vmem:[#allocation6] sm:$0x1] %vm278, %v268
      %280 = vst.msk [vmem:[#allocation6 + $0x1] sm:$0x1] %vm278, %v275
    $region49: #{tpu_custom_call.1} parent=1 // pred_fallthru
      _
    // Predicated region
    $region50: #{tpu_custom_call.1} parent=1 // pred_check
      _
    $region51: #{tpu_custom_call.1} parent=1 // pred_check_branch
      %282 = sbr.rel (0) target = $region53
    $region52: #{tpu_custom_call.1} parent=1 // pred_region
      %s284 = ssub.s32 32, 32
      %285 = vsyncadd [#allocation5], %s284
      %s286 = sshll.u32 [#allocation6], 4
      %s287 = int_to_ptr.vmem [resolvable:$true] %s286
      %292 = dma.vmem_to_hbm [thread:$0]  %s287, 32, %s9, [#allocation5], 16, 16, 1
    $region53: #{tpu_custom_call.1} parent=1 // pred_fallthru
      _
    // Predicated region
    $region54: #{tpu_custom_call.1} parent=1 // pred_check
      _
    $region55: #{tpu_custom_call.1} parent=1 // pred_check_branch
      %294 = sbr.rel (0) target = $region57
    $region56: #{tpu_custom_call.1} parent=1 // pred_region
      %295 = dma.done [#allocation5], 32
    $region57: #{tpu_custom_call.1} parent=1 // pred_fallthru
      _
    %296 = vsyncpa [#allocation4], 1
    %297 = vsyncpa [#allocation5], 1

</llo_original>
